<compile_context>
chip_gen: v7x
topology: tpu7x:2x2x1
jax: 0.10.0
libtpu: 0.0.40
codegen_flags: <defaults>
</compile_context>

<pallas_src>
import functools

import jax
import jax.numpy as jnp
from jax.experimental import pallas as pl
from jax.experimental.pallas import tpu as pltpu


BN_EPS = 1e-5
LANE = 128            # TPU lane width: channel-like dims padded to this
SUBLANE = 8
TILE_M_TARGET = 512   # rows (N*Ho*Wo) per grid step; multiple of 8


def _ceil_to(v, m):
    return ((v + m - 1) // m) * m


def _pad2d(a, rows, cols):
    r, c = a.shape
    if r == rows and c == cols:
        return a
    return jnp.pad(a, ((0, rows - r), (0, cols - c)))


def _pad_vec(v, n):
    v = v.astype(jnp.float32)
    return v if v.shape[0] == n else jnp.pad(v, (0, n - v.shape[0]))


# ---------------------------------------------------------------------------
# Pallas kernels
# ---------------------------------------------------------------------------
def _conv_stats_kernel(p_ref, w_ref, y_ref, stat_ref):
    """Pass A: one M-tile.  y = patches @ W as a single fused MXU contraction
    (bf16 in, f32 accumulate); store y (bf16, lane-dense) and the per-tile
    partial BN statistics (sum, sum of squares) over the tile rows."""
    y = jnp.dot(p_ref[...], w_ref[...], preferred_element_type=jnp.float32)
    y_ref[...] = y.astype(y_ref.dtype)
    stat_ref[0:1, :] = jnp.sum(y, axis=0, keepdims=True)
    stat_ref[1:2, :] = jnp.sum(y * y, axis=0, keepdims=True)


def conv_stats_pallas(patches, w_mat, *, tile_m, out_dtype=jnp.bfloat16):
    """patches: (Mp, KCp) bf16, w_mat: (KCp, Cp) bf16.
    Returns y: (Mp, Cp) out_dtype and partial stats: (num_tiles, 2, Cp) f32."""
    mp, kcp = patches.shape
    _, cp = w_mat.shape
    nt = mp // tile_m
    return pl.pallas_call(
        _conv_stats_kernel,
        out_shape=(
            jax.ShapeDtypeStruct((mp, cp), out_dtype),
            jax.ShapeDtypeStruct((nt, 2, cp), jnp.float32),
        ),
        grid=(nt,),
        in_specs=[
            pl.BlockSpec((tile_m, kcp), lambda i: (i, 0)),   # patch tile
            pl.BlockSpec((kcp, cp), lambda i: (0, 0)),       # weights (resident)
        ],
        out_specs=(
            pl.BlockSpec((tile_m, cp), lambda i: (i, 0)),    # conv output tile
            pl.BlockSpec((None, 2, cp), lambda i: (i, 0, 0)),  # per-tile stats
        ),
        compiler_params=pltpu.CompilerParams(
            dimension_semantics=("parallel",),
        ),
    )(patches, w_mat)


def _make_bn_apply_kernel(has_res, relu):
    """Pass B: out = [relu]( y*scale + shift [+ r*res_scale + res_shift] )."""

    def kernel(*refs):
        if has_res:
            y_ref, s_ref, t_ref, r_ref, rs_ref, rt_ref, o_ref = refs
        else:
            y_ref, s_ref, t_ref, o_ref = refs
        out = y_ref[...].astype(jnp.float32) * s_ref[...] + t_ref[...]
        if has_res:
            out = out + r_ref[...].astype(jnp.float32) * rs_ref[...] + rt_ref[...]
        if relu:
            out = jnp.maximum(out, 0.0)
        o_ref[...] = out.astype(o_ref.dtype)

    return kernel


def bn_apply_pallas(y, scale, shift, *, tile_m, relu,
                    residual=None, out_dtype=jnp.float32):
    mp, cp = y.shape
    nt = mp // tile_m
    has_res = residual is not None

    row_spec = pl.BlockSpec((tile_m, cp), lambda i: (i, 0))
    vec_spec = pl.BlockSpec((1, cp), lambda i: (0, 0))

    in_specs = [row_spec, vec_spec, vec_spec]
    args = [y, scale, shift]
    if has_res:
        r, rs, rt = residual
        in_specs += [row_spec, vec_spec, vec_spec]
        args += [r, rs, rt]

    return pl.pallas_call(
        _make_bn_apply_kernel(has_res, relu),
        out_shape=jax.ShapeDtypeStruct((mp, cp), out_dtype),
        grid=(nt,),
        in_specs=in_specs,
        out_specs=row_spec,
        compiler_params=pltpu.CompilerParams(
            dimension_semantics=("parallel",),
        ),
    )(*args)


# ---------------------------------------------------------------------------
# Plain-JAX glue (layout / im2col / stat-folding)
# ---------------------------------------------------------------------------
def _extract_patches(x_nhwc, ksize, stride, pad):
    """im2col glue: (N,H,W,C) -> (N*Ho*Wo, ksize*ksize*C), taps ordered (ky,kx,c)."""
    # TODO(synk): avoid materializing the k*k-amplified slab in HBM for the 3x3
    # convs by DMA-ing shifted windows of the padded NHWC input per M-tile
    # (memory_space=pl.ANY + pltpu.make_async_copy); needs a (batch, row-tile)
    # grid instead of a flat-M grid.
    N, H, W, C = x_nhwc.shape
    xp = jnp.pad(x_nhwc, ((0, 0), (pad, pad), (pad, pad), (0, 0)))
    Ho = (H + 2 * pad - ksize) // stride + 1
    Wo = (W + 2 * pad - ksize) // stride + 1
    taps = []
    for ky in range(ksize):
        for kx in range(ksize):
            taps.append(
                xp[:, ky:ky + (Ho - 1) * stride + 1:stride,
                      kx:kx + (Wo - 1) * stride + 1:stride, :]
            )
    p = jnp.concatenate(taps, axis=-1)                # (N, Ho, Wo, k*k*C)
    return p.reshape(N * Ho * Wo, ksize * ksize * C), (N, Ho, Wo)


def _weight_matrix(w_oihw):
    """PyTorch conv weight (Cout,Cin,kh,kw) -> (kh*kw*Cin, Cout); row order
    (ky,kx,cin) matches the column order of _extract_patches."""
    Cout, Cin, kh, kw = w_oihw.shape
    return jnp.transpose(w_oihw, (2, 3, 1, 0)).reshape(kh * kw * Cin, Cout)


def _conv_with_stats(patches, w_oihw, gamma, beta, *, tile_m, mp, cp, m_true):
    """Pass A + stat folding: returns (y bf16 (mp,cp), scale (1,cp), shift (1,cp))
    where BN(y) = y*scale + shift (train-mode, biased batch variance)."""
    _, kc = patches.shape
    kcp = _ceil_to(kc, LANE)
    p = _pad2d(patches, mp, kcp).astype(jnp.bfloat16)
    w = _pad2d(_weight_matrix(w_oihw), kcp, cp).astype(jnp.bfloat16)

    y, part = conv_stats_pallas(p, w, tile_m=tile_m)

    tot = jnp.sum(part, axis=0)                       # (2, cp) f32
    mean = tot[0] / m_true                            # zero-padded rows add 0
    var = jnp.maximum(tot[1] / m_true - mean * mean, 0.0)
    scale = _pad_vec(gamma, cp) * jax.lax.rsqrt(var + BN_EPS)
    shift = _pad_vec(beta, cp) - mean * scale
    return y, scale.reshape(1, cp), shift.reshape(1, cp)


# ---------------------------------------------------------------------------
# DLABasicBlock forward
# ---------------------------------------------------------------------------
@functools.partial(jax.jit, static_argnames=("stride",))
def dla_basic_block_forward(x_nchw, params, stride):
    x = jnp.transpose(x_nchw, (0, 2, 3, 1)).astype(jnp.float32)  # NCHW -> NHWC
    N, H, W, cin = x.shape
    planes = params["w1"].shape[0]

    ho = (H + 2 - 3) // stride + 1
    wo = (W + 2 - 3) // stride + 1
    m = N * ho * wo
    tile_m = min(TILE_M_TARGET, _ceil_to(m, SUBLANE))
    mp = _ceil_to(m, tile_m)
    cp = _ceil_to(planes, LANE)                       # lane-dense output width

    x_bf = x.astype(jnp.bfloat16)   # bf16 matmul inputs / residual; BN math f32

    # ---- conv1 (3x3, stride) + bn1 + relu --------------------------------
    p1, _ = _extract_patches(x_bf, 3, stride, 1)
    y1, s1, t1 = _conv_with_stats(p1, params["w1"], params["g1"], params["b1"],
                                  tile_m=tile_m, mp=mp, cp=cp, m_true=m)
    out1 = bn_apply_pallas(y1, s1, t1, tile_m=tile_m, relu=True,
                           out_dtype=jnp.bfloat16)
    out1_nhwc = out1[:m, :planes].reshape(N, ho, wo, planes)

    # ---- shortcut: identity or 1x1 conv (stride) + bn --------------------
    if stride != 1 or cin != planes:
        ps, _ = _extract_patches(x_bf, 1, stride, 0)
        rs_y, rs_s, rs_t = _conv_with_stats(
            ps, params["ws"], params["gs"], params["bs"],
            tile_m=tile_m, mp=mp, cp=cp, m_true=m)
    else:
        rs_y = _pad2d(x_bf.reshape(m, cin), mp, cp)
        rs_s = jnp.ones((1, cp), jnp.float32)
        rs_t = jnp.zeros((1, cp), jnp.float32)

    # ---- conv2 (3x3, stride 1) + bn2 + residual(+its bn) + relu ----------
    p2, _ = _extract_patches(out1_nhwc, 3, 1, 1)
    y2, s2, t2 = _conv_with_stats(p2, params["w2"], params["g2"], params["b2"],
                                  tile_m=tile_m, mp=mp, cp=cp, m_true=m)
    out = bn_apply_pallas(y2, s2, t2, tile_m=tile_m, relu=True,
                          residual=(rs_y, rs_s, rs_t), out_dtype=jnp.float32)

    out = out[:m, :planes].reshape(N, ho, wo, planes)
    return jnp.transpose(out, (0, 3, 1, 2))                      # NHWC -> NCHW


# ---------------------------------------------------------------------------
# Parameters / reference / demo
# ---------------------------------------------------------------------------
def init_params(key, in_planes, planes, stride):
    ks = jax.random.split(key, 9)
    params = {
        "w1": 0.1 * jax.random.normal(ks[0], (planes, in_planes, 3, 3), jnp.float32),
        "g1": 1.0 + 0.1 * jax.random.normal(ks[1], (planes,), jnp.float32),
        "b1": 0.1 * jax.random.normal(ks[2], (planes,), jnp.float32),
        "w2": 0.1 * jax.random.normal(ks[3], (planes, planes, 3, 3), jnp.float32),
        "g2": 1.0 + 0.1 * jax.random.normal(ks[4], (planes,), jnp.float32),
        "b2": 0.1 * jax.random.normal(ks[5], (planes,), jnp.float32),
    }
    if stride != 1 or in_planes != planes:
        params["ws"] = 0.1 * jax.random.normal(
            ks[6], (planes, in_planes, 1, 1), jnp.float32)
        params["gs"] = 1.0 + 0.05 * jax.random.normal(ks[7], (planes,), jnp.float32)
        params["bs"] = 0.05 * jax.random.normal(ks[8], (planes,), jnp.float32)
    return params


def _reference_forward(x_nchw, params, stride):
    """Plain-JAX f32 reference of PyTorch train-mode DLABasicBlock.forward."""
    x = jnp.transpose(x_nchw, (0, 2, 3, 1)).astype(jnp.float32)
    _, _, _, cin = x.shape
    planes = params["w1"].shape[0]

    def conv(inp, w, k, s, pad):
        p, dims = _extract_patches(inp, k, s, pad)
        return p @ _weight_matrix(w), dims

    def bn(y, g, b):
        mean = jnp.mean(y, axis=0, keepdims=True)
        var = jnp.mean((y - mean) ** 2, axis=0, keepdims=True)
        return (y - mean) * (g * jax.lax.rsqrt(var + BN_EPS)) + b

    y1, (n, ho, wo) = conv(x, params["w1"], 3, stride, 1)
    out1 = jnp.maximum(bn(y1, params["g1"], params["b1"]), 0.0)
    y2, _ = conv(out1.reshape(n, ho, wo, planes), params["w2"], 3, 1, 1)
    out2 = bn(y2, params["g2"], params["b2"])
    if stride != 1 or cin != planes:
        ysc, _ = conv(x, params["ws"], 1, stride, 0)
        short = bn(ysc, params["gs"], params["bs"])
    else:
        short = x.reshape(-1, cin)
    out = jnp.maximum(out2 + short, 0.0).reshape(n, ho, wo, planes)
    return jnp.transpose(out, (0, 3, 1, 2))


if __name__ == "__main__":
    key = jax.random.PRNGKey(0)
    k_x, k_p = jax.random.split(key)

    N, in_planes, H, W = 2, 4, 16, 16
    planes, stride = 8, 2          # exercises the 1x1-conv projection shortcut

    x = jax.random.normal(k_x, (N, in_planes, H, W), jnp.float32)
    params = init_params(k_p, in_planes, planes, stride)

    out = jax.block_until_ready(dla_basic_block_forward(x, params, stride))
    assert out.shape == (N, planes, H // stride, W // stride), out.shape

    ref = _reference_forward(x, params, stride)
    err = float(jnp.max(jnp.abs(out - ref)))
    # bf16 matmul inputs / bf16 intermediates -> loose tolerance vs f32 reference
    assert err < 1e-1, f"max |kernel - reference| too large: {err}"

    print("KERNEL_OK")
</pallas_src>

<mosaic_0001>
module attributes {stable_mosaic.version = 11 : i64} {
  func.func @kernel(%arg0: i32, %arg1: memref<128x128xbf16, #tpu.memory_space<vmem>>, %arg2: memref<1x128xf32, #tpu.memory_space<vmem>>, %arg3: memref<1x128xf32, #tpu.memory_space<vmem>>, %arg4: memref<128x128xbf16, #tpu.memory_space<vmem>>) attributes {dimension_semantics = [#tpu.dimension_semantics<parallel>], iteration_bounds = array<i64: 1>, scalar_prefetch = 0 : i64, scratch_operands = 0 : i64, tpu.core_type = #tpu.core_type<tc>, window_params = [{transform_indices = @transform_0, window_bounds = array<i64: 128, 128>}, {pipeline_mode = #tpu.pipeline_mode<synchronous>, transform_indices = @transform_1, window_bounds = array<i64: 1, 128>}, {pipeline_mode = #tpu.pipeline_mode<synchronous>, transform_indices = @transform_2, window_bounds = array<i64: 1, 128>}, {transform_indices = @transform_3, window_bounds = array<i64: 128, 128>}]} {
    %c0 = arith.constant 0 : index
    %c0_0 = arith.constant 0 : index
    %0 = vector.load %arg1[%c0, %c0_0] : memref<128x128xbf16, #tpu.memory_space<vmem>>, vector<128x128xbf16>
    %1 = arith.extf %0 : vector<128x128xbf16> to vector<128x128xf32>
    %c0_1 = arith.constant 0 : index
    %c0_2 = arith.constant 0 : index
    %2 = vector.load %arg2[%c0_1, %c0_2] : memref<1x128xf32, #tpu.memory_space<vmem>>, vector<1x128xf32>
    %3 = vector.broadcast %2 : vector<1x128xf32> to vector<128x128xf32>
    %4 = arith.mulf %1, %3 : vector<128x128xf32>
    %c0_3 = arith.constant 0 : index
    %c0_4 = arith.constant 0 : index
    %5 = vector.load %arg3[%c0_3, %c0_4] : memref<1x128xf32, #tpu.memory_space<vmem>>, vector<1x128xf32>
    %6 = vector.broadcast %5 : vector<1x128xf32> to vector<128x128xf32>
    %7 = arith.addf %4, %6 : vector<128x128xf32>
    %cst = arith.constant 0.000000e+00 : f32
    %8 = vector.broadcast %cst : f32 to vector<128x128xf32>
    %9 = arith.maximumf %7, %8 : vector<128x128xf32>
    %10 = arith.truncf %9 : vector<128x128xf32> to vector<128x128xbf16>
    %c0_5 = arith.constant 0 : index
    %c0_6 = arith.constant 0 : index
    %11 = vector.load %arg4[%c0_5, %c0_6] : memref<128x128xbf16, #tpu.memory_space<vmem>>, vector<128x128xbf16>
    tpu.vector_store %arg4[%c0_5, %c0_6], %10 {strides = array<i32>} : memref<128x128xbf16, #tpu.memory_space<vmem>>, vector<128x128xbf16>,
    return
  }
  func.func @transform_0(%arg0: i32) -> (i32, i32) {
    %c0_i32 = arith.constant 0 : i32
    %c0_i32_0 = arith.constant 0 : i32
    return %arg0, %c0_i32 : i32, i32
  }
  func.func @transform_1(%arg0: i32) -> (i32, i32) {
    %c0_i32 = arith.constant 0 : i32
    %c0_i32_0 = arith.constant 0 : i32
    %c0_i32_1 = arith.constant 0 : i32
    return %c0_i32, %c0_i32_0 : i32, i32
  }
  func.func @transform_2(%arg0: i32) -> (i32, i32) {
    %c0_i32 = arith.constant 0 : i32
    %c0_i32_0 = arith.constant 0 : i32
    %c0_i32_1 = arith.constant 0 : i32
    return %c0_i32, %c0_i32_0 : i32, i32
  }
  func.func @transform_3(%arg0: i32) -> (i32, i32) {
    %c0_i32 = arith.constant 0 : i32
    %c0_i32_0 = arith.constant 0 : i32
    return %arg0, %c0_i32 : i32, i32
  }
}

module attributes {stable_mosaic.version = 11 : i64} {
  func.func @_conv_stats_kernel(%arg0: i32, %arg1: memref<128x128xbf16, #tpu.memory_space<vmem>>, %arg2: memref<128x128xbf16, #tpu.memory_space<vmem>>, %arg3: memref<128x128xbf16, #tpu.memory_space<vmem>>, %arg4: memref<1x2x128xf32, #tpu.memory_space<vmem>>) attributes {dimension_semantics = [#tpu.dimension_semantics<parallel>], iteration_bounds = array<i64: 1>, scalar_prefetch = 0 : i64, scratch_operands = 0 : i64, tpu.core_type = #tpu.core_type<tc>, window_params = [{transform_indices = @transform_0, window_bounds = array<i64: 128, 128>}, {pipeline_mode = #tpu.pipeline_mode<synchronous>, transform_indices = @transform_1, window_bounds = array<i64: 128, 128>}, {transform_indices = @transform_2, window_bounds = array<i64: 128, 128>}, {transform_indices = @transform_3, window_bounds = array<i64: 1, 2, 128>}]} {
    %c0 = arith.constant 0 : index
    %c0_0 = arith.constant 0 : index
    %0 = vector.load %arg1[%c0, %c0_0] : memref<128x128xbf16, #tpu.memory_space<vmem>>, vector<128x128xbf16>
    %c0_1 = arith.constant 0 : index
    %c0_2 = arith.constant 0 : index
    %1 = vector.load %arg2[%c0_1, %c0_2] : memref<128x128xbf16, #tpu.memory_space<vmem>>, vector<128x128xbf16>
    %cst = arith.constant dense<0.000000e+00> : vector<128x128xf32>
    %2 = tpu.matmul %0, %1, %cst {dimension_numbers = #tpu.dot_dimension_numbers<[1], [0], [0], [1], [0, 0, 1, 1], [], []>} : vector<128x128xbf16>, vector<128x128xbf16>, vector<128x128xf32> -> vector<128x128xf32>
    %3 = arith.truncf %2 : vector<128x128xf32> to vector<128x128xbf16>
    %c0_3 = arith.constant 0 : index
    %c0_4 = arith.constant 0 : index
    %4 = vector.load %arg3[%c0_3, %c0_4] : memref<128x128xbf16, #tpu.memory_space<vmem>>, vector<128x128xbf16>
    tpu.vector_store %arg3[%c0_3, %c0_4], %3 {strides = array<i32>} : memref<128x128xbf16, #tpu.memory_space<vmem>>, vector<128x128xbf16>,
    %cst_5 = arith.constant dense<0.000000e+00> : vector<128xf32>
    %5 = vector.multi_reduction <add>, %2, %cst_5 [0] : vector<128x128xf32> to vector<128xf32>
    %6 = vector.shape_cast %5 : vector<128xf32> to vector<1x128xf32>
    %c0_6 = arith.constant 0 : index
    %c0_7 = arith.constant 0 : index
    %c0_8 = arith.constant 0 : index
    %7 = vector.load %arg4[%c0_6, %c0_7, %c0_8] : memref<1x2x128xf32, #tpu.memory_space<vmem>>, vector<1x1x128xf32>
    %8 = vector.shape_cast %7 : vector<1x1x128xf32> to vector<1x128xf32>
    %9 = vector.shape_cast %6 : vector<1x128xf32> to vector<1x1x128xf32>
    tpu.vector_store %arg4[%c0_6, %c0_7, %c0_8], %9 {strides = array<i32>} : memref<1x2x128xf32, #tpu.memory_space<vmem>>, vector<1x1x128xf32>,
    %10 = arith.mulf %2, %2 : vector<128x128xf32>
    %cst_9 = arith.constant dense<0.000000e+00> : vector<128xf32>
    %11 = vector.multi_reduction <add>, %10, %cst_9 [0] : vector<128x128xf32> to vector<128xf32>
    %12 = vector.shape_cast %11 : vector<128xf32> to vector<1x128xf32>
    %c0_10 = arith.constant 0 : index
    %c1 = arith.constant 1 : index
    %c0_11 = arith.constant 0 : index
    %13 = vector.load %arg4[%c0_10, %c1, %c0_11] : memref<1x2x128xf32, #tpu.memory_space<vmem>>, vector<1x1x128xf32>
    %14 = vector.shape_cast %13 : vector<1x1x128xf32> to vector<1x128xf32>
    %15 = vector.shape_cast %12 : vector<1x128xf32> to vector<1x1x128xf32>
    tpu.vector_store %arg4[%c0_10, %c1, %c0_11], %15 {strides = array<i32>} : memref<1x2x128xf32, #tpu.memory_space<vmem>>, vector<1x1x128xf32>,
    return
  }
  func.func @transform_0(%arg0: i32) -> (i32, i32) {
    %c0_i32 = arith.constant 0 : i32
    %c0_i32_0 = arith.constant 0 : i32
    return %arg0, %c0_i32 : i32, i32
  }
  func.func @transform_1(%arg0: i32) -> (i32, i32) {
    %c0_i32 = arith.constant 0 : i32
    %c0_i32_0 = arith.constant 0 : i32
    %c0_i32_1 = arith.constant 0 : i32
    return %c0_i32, %c0_i32_0 : i32, i32
  }
  func.func @transform_2(%arg0: i32) -> (i32, i32) {
    %c0_i32 = arith.constant 0 : i32
    %c0_i32_0 = arith.constant 0 : i32
    return %arg0, %c0_i32 : i32, i32
  }
  func.func @transform_3(%arg0: i32) -> (i32, i32, i32) {
    %c0_i32 = arith.constant 0 : i32
    %c0_i32_0 = arith.constant 0 : i32
    %c0_i32_1 = arith.constant 0 : i32
    return %arg0, %c0_i32, %c0_i32_0 : i32, i32, i32
  }
}

module attributes {stable_mosaic.version = 11 : i64} {
  func.func @kernel(%arg0: i32, %arg1: memref<128x128xbf16, #tpu.memory_space<vmem>>, %arg2: memref<1x128xf32, #tpu.memory_space<vmem>>, %arg3: memref<1x128xf32, #tpu.memory_space<vmem>>, %arg4: memref<128x128xbf16, #tpu.memory_space<vmem>>, %arg5: memref<1x128xf32, #tpu.memory_space<vmem>>, %arg6: memref<1x128xf32, #tpu.memory_space<vmem>>, %arg7: memref<128x128xf32, #tpu.memory_space<vmem>>) attributes {dimension_semantics = [#tpu.dimension_semantics<parallel>], iteration_bounds = array<i64: 1>, scalar_prefetch = 0 : i64, scratch_operands = 0 : i64, tpu.core_type = #tpu.core_type<tc>, window_params = [{transform_indices = @transform_0, window_bounds = array<i64: 128, 128>}, {pipeline_mode = #tpu.pipeline_mode<synchronous>, transform_indices = @transform_1, window_bounds = array<i64: 1, 128>}, {pipeline_mode = #tpu.pipeline_mode<synchronous>, transform_indices = @transform_2, window_bounds = array<i64: 1, 128>}, {transform_indices = @transform_3, window_bounds = array<i64: 128, 128>}, {pipeline_mode = #tpu.pipeline_mode<synchronous>, transform_indices = @transform_4, window_bounds = array<i64: 1, 128>}, {pipeline_mode = #tpu.pipeline_mode<synchronous>, transform_indices = @transform_5, window_bounds = array<i64: 1, 128>}, {transform_indices = @transform_6, window_bounds = array<i64: 128, 128>}]} {
    %c0 = arith.constant 0 : index
    %c0_0 = arith.constant 0 : index
    %0 = vector.load %arg1[%c0, %c0_0] : memref<128x128xbf16, #tpu.memory_space<vmem>>, vector<128x128xbf16>
    %1 = arith.extf %0 : vector<128x128xbf16> to vector<128x128xf32>
    %c0_1 = arith.constant 0 : index
    %c0_2 = arith.constant 0 : index
    %2 = vector.load %arg2[%c0_1, %c0_2] : memref<1x128xf32, #tpu.memory_space<vmem>>, vector<1x128xf32>
    %3 = vector.broadcast %2 : vector<1x128xf32> to vector<128x128xf32>
    %4 = arith.mulf %1, %3 : vector<128x128xf32>
    %c0_3 = arith.constant 0 : index
    %c0_4 = arith.constant 0 : index
    %5 = vector.load %arg3[%c0_3, %c0_4] : memref<1x128xf32, #tpu.memory_space<vmem>>, vector<1x128xf32>
    %6 = vector.broadcast %5 : vector<1x128xf32> to vector<128x128xf32>
    %7 = arith.addf %4, %6 : vector<128x128xf32>
    %c0_5 = arith.constant 0 : index
    %c0_6 = arith.constant 0 : index
    %8 = vector.load %arg4[%c0_5, %c0_6] : memref<128x128xbf16, #tpu.memory_space<vmem>>, vector<128x128xbf16>
    %9 = arith.extf %8 : vector<128x128xbf16> to vector<128x128xf32>
    %c0_7 = arith.constant 0 : index
    %c0_8 = arith.constant 0 : index
    %10 = vector.load %arg5[%c0_7, %c0_8] : memref<1x128xf32, #tpu.memory_space<vmem>>, vector<1x128xf32>
    %11 = vector.broadcast %10 : vector<1x128xf32> to vector<128x128xf32>
    %12 = arith.mulf %9, %11 : vector<128x128xf32>
    %13 = arith.addf %7, %12 : vector<128x128xf32>
    %c0_9 = arith.constant 0 : index
    %c0_10 = arith.constant 0 : index
    %14 = vector.load %arg6[%c0_9, %c0_10] : memref<1x128xf32, #tpu.memory_space<vmem>>, vector<1x128xf32>
    %15 = vector.broadcast %14 : vector<1x128xf32> to vector<128x128xf32>
    %16 = arith.addf %13, %15 : vector<128x128xf32>
    %cst = arith.constant 0.000000e+00 : f32
    %17 = vector.broadcast %cst : f32 to vector<128x128xf32>
    %18 = arith.maximumf %16, %17 : vector<128x128xf32>
    %c0_11 = arith.constant 0 : index
    %c0_12 = arith.constant 0 : index
    %19 = vector.load %arg7[%c0_11, %c0_12] : memref<128x128xf32, #tpu.memory_space<vmem>>, vector<128x128xf32>
    tpu.vector_store %arg7[%c0_11, %c0_12], %18 {strides = array<i32>} : memref<128x128xf32, #tpu.memory_space<vmem>>, vector<128x128xf32>,
    return
  }
  func.func @transform_0(%arg0: i32) -> (i32, i32) {
    %c0_i32 = arith.constant 0 : i32
    %c0_i32_0 = arith.constant 0 : i32
    return %arg0, %c0_i32 : i32, i32
  }
  func.func @transform_1(%arg0: i32) -> (i32, i32) {
    %c0_i32 = arith.constant 0 : i32
    %c0_i32_0 = arith.constant 0 : i32
    %c0_i32_1 = arith.constant 0 : i32
    return %c0_i32, %c0_i32_0 : i32, i32
  }
  func.func @transform_2(%arg0: i32) -> (i32, i32) {
    %c0_i32 = arith.constant 0 : i32
    %c0_i32_0 = arith.constant 0 : i32
    %c0_i32_1 = arith.constant 0 : i32
    return %c0_i32, %c0_i32_0 : i32, i32
  }
  func.func @transform_3(%arg0: i32) -> (i32, i32) {
    %c0_i32 = arith.constant 0 : i32
    %c0_i32_0 = arith.constant 0 : i32
    return %arg0, %c0_i32 : i32, i32
  }
  func.func @transform_4(%arg0: i32) -> (i32, i32) {
    %c0_i32 = arith.constant 0 : i32
    %c0_i32_0 = arith.constant 0 : i32
    %c0_i32_1 = arith.constant 0 : i32
    return %c0_i32, %c0_i32_0 : i32, i32
  }
  func.func @transform_5(%arg0: i32) -> (i32, i32) {
    %c0_i32 = arith.constant 0 : i32
    %c0_i32_0 = arith.constant 0 : i32
    %c0_i32_1 = arith.constant 0 : i32
    return %c0_i32, %c0_i32_0 : i32, i32
  }
  func.func @transform_6(%arg0: i32) -> (i32, i32) {
    %c0_i32 = arith.constant 0 : i32
    %c0_i32_0 = arith.constant 0 : i32
    return %arg0, %c0_i32 : i32, i32
  }
}

</mosaic_0001>

<llo_original>
// kernel: dla_basic_block_forward.6
$region0: #{dla_basic_block_forward.6}
  #allocation0 [shape = 'u32[]', space=smem, size = 0x4, offset = 0x4, fixed_abs, tag = 'smem constant byte address 0x4 - core index']
  #allocation1 [shape = 'u32[144,128]{1,0:T(1,128)}', space=vmem, size = 0x12000, scoped, tag = 'internal scratch']
  %s0 = inlined_call_operand.vmem [shape: bf16[128,128], index: 0, kind: input, shape index: {}]
  %s1 = inlined_call_operand.vmem [shape: f32[1,128], index: 1, kind: input, shape index: {}]
  %s2 = inlined_call_operand.vmem [shape: f32[1,128], index: 2, kind: input, shape index: {}]
  %s3 = inlined_call_operand.vmem [shape: bf16[128,128], index: 3, kind: output, shape index: {}]
  %s4 = sld [smem:[#allocation0]]
  $region22: #{dla_basic_block_forward.6} parent=0
    _
  %s6 = ssub.s32 1, %s4
  %s7 = scalar_select 0, %s6, %s4
  // Predicated region
  $region2: #{dla_basic_block_forward.6} parent=0 // pred_check
    _
  $region3: #{dla_basic_block_forward.6} parent=0 // pred_check_branch
    %9 = sbr.rel (0) target = $region5
  $region4: #{dla_basic_block_forward.6} parent=0 // pred_region
    _
  $region5: #{dla_basic_block_forward.6} parent=0 // pred_fallthru
    _
  // Predicated region
  $region6: #{dla_basic_block_forward.6} parent=0 // pred_check
    _
  $region7: #{dla_basic_block_forward.6} parent=0 // pred_check_branch
    %11 = sbr.rel (0) target = $region9
  $region8: #{dla_basic_block_forward.6} parent=0 // pred_region
    _
  $region9: #{dla_basic_block_forward.6} parent=0 // pred_fallthru
    _
  // Predicated region
  $region10: #{dla_basic_block_forward.6} parent=0 // pred_check
    _
  $region11: #{dla_basic_block_forward.6} parent=0 // pred_check_branch
    %13 = sbr.rel (0) target = $region13
  $region12: #{dla_basic_block_forward.6} parent=0 // pred_region
    _
  $region13: #{dla_basic_block_forward.6} parent=0 // pred_fallthru
    _
  %v14 = vld [vmem:[%s0] sm:$0xf]
  %v15 = vld [vmem:[%s0 + $0x4] sm:$0xf]
  %v16 = vld [vmem:[%s0 + $0x8] sm:$0xf]
  %v17 = vld [vmem:[%s0 + $0xc] sm:$0xf]
  %v18 = vld [vmem:[%s0 + $0x10] sm:$0xf]
  %v19 = vld [vmem:[%s0 + $0x14] sm:$0xf]
  %v20 = vld [vmem:[%s0 + $0x18] sm:$0xf]
  %v21 = vld [vmem:[%s0 + $0x1c] sm:$0xf]
  %v22 = vld [vmem:[%s0 + $0x20] sm:$0xf]
  %v23 = vld [vmem:[%s0 + $0x24] sm:$0xf]
  %v24 = vld [vmem:[%s0 + $0x28] sm:$0xf]
  %v25 = vld [vmem:[%s0 + $0x2c] sm:$0xf]
  %v26 = vld [vmem:[%s0 + $0x30] sm:$0xf]
  %v27 = vld [vmem:[%s0 + $0x34] sm:$0xf]
  %v28 = vld [vmem:[%s0 + $0x38] sm:$0xf]
  %v29 = vld [vmem:[%s0 + $0x3c] sm:$0xf]
  %v30 = vunpack.c.l.bf16 %v14
  %v31 = vunpack.c.l.bf16 %v15
  %v32 = vunpack.c.l.bf16 %v16
  %v33 = vunpack.c.l.bf16 %v17
  %v34 = vunpack.c.l.bf16 %v18
  %v35 = vunpack.c.l.bf16 %v19
  %v36 = vunpack.c.l.bf16 %v20
  %v37 = vunpack.c.l.bf16 %v21
  %v38 = vunpack.c.l.bf16 %v22
  %v39 = vunpack.c.l.bf16 %v23
  %v40 = vunpack.c.l.bf16 %v24
  %v41 = vunpack.c.l.bf16 %v25
  %v42 = vunpack.c.l.bf16 %v26
  %v43 = vunpack.c.l.bf16 %v27
  %v44 = vunpack.c.l.bf16 %v28
  %v45 = vunpack.c.l.bf16 %v29
  %v46 = vld [vmem:[%s1] sm:$0x1]
  %v48 = vlaneseq
  %v49 = vshrl.u32 %v48, 7
  %v50 = vsub.s32 0, %v49
  %v51 = vrot.slane %v46, %v50
  %v53 = vmul.f32 %v30, %v51
  %v54 = vmul.f32 %v31, %v51
  %v55 = vmul.f32 %v32, %v51
  %v56 = vmul.f32 %v33, %v51
  %v57 = vmul.f32 %v34, %v51
  %v58 = vmul.f32 %v35, %v51
  %v59 = vmul.f32 %v36, %v51
  %v60 = vmul.f32 %v37, %v51
  %v61 = vmul.f32 %v38, %v51
  %v62 = vmul.f32 %v39, %v51
  %v63 = vmul.f32 %v40, %v51
  %v64 = vmul.f32 %v41, %v51
  %v65 = vmul.f32 %v42, %v51
  %v66 = vmul.f32 %v43, %v51
  %v67 = vmul.f32 %v44, %v51
  %v68 = vmul.f32 %v45, %v51
  %v69 = vld [vmem:[%s2] sm:$0x1]
  %v71 = vlaneseq
  %v72 = vshrl.u32 %v71, 7
  %v73 = vsub.s32 0, %v72
  %v74 = vrot.slane %v69, %v73
  %v76 = vadd.f32 %v53, %v74
  %v77 = vadd.f32 %v54, %v74
  %v78 = vadd.f32 %v55, %v74
  %v79 = vadd.f32 %v56, %v74
  %v80 = vadd.f32 %v57, %v74
  %v81 = vadd.f32 %v58, %v74
  %v82 = vadd.f32 %v59, %v74
  %v83 = vadd.f32 %v60, %v74
  %v84 = vadd.f32 %v61, %v74
  %v85 = vadd.f32 %v62, %v74
  %v86 = vadd.f32 %v63, %v74
  %v87 = vadd.f32 %v64, %v74
  %v88 = vadd.f32 %v65, %v74
  %v89 = vadd.f32 %v66, %v74
  %v90 = vadd.f32 %v67, %v74
  %v91 = vadd.f32 %v68, %v74
  %v92 = vmax.f32 %v76, 0.0
  %v93 = vmax.f32 %v77, 0.0
  %v94 = vmax.f32 %v78, 0.0
  %v95 = vmax.f32 %v79, 0.0
  %v96 = vmax.f32 %v80, 0.0
  %v97 = vmax.f32 %v81, 0.0
  %v98 = vmax.f32 %v82, 0.0
  %v99 = vmax.f32 %v83, 0.0
  %v100 = vmax.f32 %v84, 0.0
  %v101 = vmax.f32 %v85, 0.0
  %v102 = vmax.f32 %v86, 0.0
  %v103 = vmax.f32 %v87, 0.0
  %v104 = vmax.f32 %v88, 0.0
  %v105 = vmax.f32 %v89, 0.0
  %v106 = vmax.f32 %v90, 0.0
  %v107 = vmax.f32 %v91, 0.0
  %v108 = vpack.c.bf16 %v93, %v92
  %v109 = vpack.c.bf16 %v95, %v94
  %v110 = vpack.c.bf16 %v97, %v96
  %v111 = vpack.c.bf16 %v99, %v98
  %v112 = vpack.c.bf16 %v101, %v100
  %v113 = vpack.c.bf16 %v103, %v102
  %v114 = vpack.c.bf16 %v105, %v104
  %v115 = vpack.c.bf16 %v107, %v106
  %v124 = vunpack.c.l.b16 %v108
  %v125 = vunpack.c.h.b16 %v108
  %v126 = vunpack.c.l.b16 %v109
  %v127 = vunpack.c.h.b16 %v109
  %v128 = vunpack.c.l.b16 %v110
  %v129 = vunpack.c.h.b16 %v110
  %v130 = vunpack.c.l.b16 %v111
  %v131 = vunpack.c.h.b16 %v111
  %v132 = vunpack.c.l.b16 %v112
  %v133 = vunpack.c.h.b16 %v112
  %v134 = vunpack.c.l.b16 %v113
  %v135 = vunpack.c.h.b16 %v113
  %v136 = vunpack.c.l.b16 %v114
  %v137 = vunpack.c.h.b16 %v114
  %v138 = vunpack.c.l.b16 %v115
  %v139 = vunpack.c.h.b16 %v115
  %v140 = vpack.c.b16 %v124, %v124
  %v141 = vpack.c.b16 %v125, %v125
  %v142 = vpack.c.b16 %v126, %v126
  %v143 = vpack.c.b16 %v127, %v127
  %v144 = vpack.c.b16 %v128, %v128
  %v145 = vpack.c.b16 %v129, %v129
  %v146 = vpack.c.b16 %v130, %v130
  %v147 = vpack.c.b16 %v131, %v131
  %v148 = vpack.c.b16 %v132, %v132
  %v149 = vpack.c.b16 %v133, %v133
  %v150 = vpack.c.b16 %v134, %v134
  %v151 = vpack.c.b16 %v135, %v135
  %v152 = vpack.c.b16 %v136, %v136
  %v153 = vpack.c.b16 %v137, %v137
  %v154 = vpack.c.b16 %v138, %v138
  %v155 = vpack.c.b16 %v139, %v139
  %172 = vst [vmem:[%s3] sm:$0xf] %v140
  %173 = vst [vmem:[%s3 + $0x4] sm:$0xf] %v141
  %174 = vst [vmem:[%s3 + $0x8] sm:$0xf] %v142
  %175 = vst [vmem:[%s3 + $0xc] sm:$0xf] %v143
  %176 = vst [vmem:[%s3 + $0x10] sm:$0xf] %v144
  %177 = vst [vmem:[%s3 + $0x14] sm:$0xf] %v145
  %178 = vst [vmem:[%s3 + $0x18] sm:$0xf] %v146
  %179 = vst [vmem:[%s3 + $0x1c] sm:$0xf] %v147
  %180 = vst [vmem:[%s3 + $0x20] sm:$0xf] %v148
  %181 = vst [vmem:[%s3 + $0x24] sm:$0xf] %v149
  %182 = vst [vmem:[%s3 + $0x28] sm:$0xf] %v150
  %183 = vst [vmem:[%s3 + $0x2c] sm:$0xf] %v151
  %184 = vst [vmem:[%s3 + $0x30] sm:$0xf] %v152
  %185 = vst [vmem:[%s3 + $0x34] sm:$0xf] %v153
  %186 = vst [vmem:[%s3 + $0x38] sm:$0xf] %v154
  %187 = vst [vmem:[%s3 + $0x3c] sm:$0xf] %v155
  // Predicated region
  $region14: #{dla_basic_block_forward.6} parent=0 // pred_check
    _
  $region15: #{dla_basic_block_forward.6} parent=0 // pred_check_branch
    %189 = sbr.rel (0) target = $region17
  $region16: #{dla_basic_block_forward.6} parent=0 // pred_region
    _
  $region17: #{dla_basic_block_forward.6} parent=0 // pred_fallthru
    _
  // Predicated region
  $region18: #{dla_basic_block_forward.6} parent=0 // pred_check
    _
  $region19: #{dla_basic_block_forward.6} parent=0 // pred_check_branch
    %191 = sbr.rel (0) target = $region21
  $region20: #{dla_basic_block_forward.6} parent=0 // pred_region
    _
  $region21: #{dla_basic_block_forward.6} parent=0 // pred_fallthru
    _

// kernel: dla_basic_block_forward.5
$region0: #{dla_basic_block_forward.5}
  #allocation0 [shape = 'u32[]', space=smem, size = 0x4, offset = 0x4, fixed_abs, tag = 'smem constant byte address 0x4 - core index']
  #allocation1 [shape = 'u32[144,128]{1,0:T(1,128)}', space=vmem, size = 0x12000, scoped, tag = 'internal scratch']
  %s0 = inlined_call_operand.vmem [shape: bf16[128,128], index: 0, kind: input, shape index: {}]
  %s1 = inlined_call_operand.vmem [shape: bf16[128,128], index: 1, kind: input, shape index: {}]
  %s2 = inlined_call_operand.vmem [shape: bf16[128,128], index: 2, kind: output, shape index: {0}]
  %s3 = inlined_call_operand.vmem [shape: f32[1,2,128], index: 3, kind: output, shape index: {1}]
  %4 = xla_tuple %s2, %s3
  %s5 = sld [smem:[#allocation0]]
  $region26: #{dla_basic_block_forward.5} parent=0
    _
  %s7 = ssub.s32 1, %s5
  %s8 = scalar_select 0, %s7, %s5
  // Predicated region
  $region2: #{dla_basic_block_forward.5} parent=0 // pred_check
    _
  $region3: #{dla_basic_block_forward.5} parent=0 // pred_check_branch
    %10 = sbr.rel (0) target = $region5
  $region4: #{dla_basic_block_forward.5} parent=0 // pred_region
    _
  $region5: #{dla_basic_block_forward.5} parent=0 // pred_fallthru
    _
  // Predicated region
  $region6: #{dla_basic_block_forward.5} parent=0 // pred_check
    _
  $region7: #{dla_basic_block_forward.5} parent=0 // pred_check_branch
    %12 = sbr.rel (0) target = $region9
  $region8: #{dla_basic_block_forward.5} parent=0 // pred_region
    _
  $region9: #{dla_basic_block_forward.5} parent=0 // pred_fallthru
    _
  %v14 = vld [vmem:[%s0] sm:$0xf]
  %v15 = vld [vmem:[%s0 + $0x4] sm:$0xf]
  %v16 = vld [vmem:[%s0 + $0x8] sm:$0xf]
  %v17 = vld [vmem:[%s0 + $0xc] sm:$0xf]
  %v18 = vld [vmem:[%s0 + $0x10] sm:$0xf]
  %v19 = vld [vmem:[%s0 + $0x14] sm:$0xf]
  %v20 = vld [vmem:[%s0 + $0x18] sm:$0xf]
  %v21 = vld [vmem:[%s0 + $0x1c] sm:$0xf]
  %v22 = vld [vmem:[%s0 + $0x20] sm:$0xf]
  %v23 = vld [vmem:[%s0 + $0x24] sm:$0xf]
  %v24 = vld [vmem:[%s0 + $0x28] sm:$0xf]
  %v25 = vld [vmem:[%s0 + $0x2c] sm:$0xf]
  %v26 = vld [vmem:[%s0 + $0x30] sm:$0xf]
  %v27 = vld [vmem:[%s0 + $0x34] sm:$0xf]
  %v28 = vld [vmem:[%s0 + $0x38] sm:$0xf]
  %v29 = vld [vmem:[%s0 + $0x3c] sm:$0xf]
  %v30 = vld [vmem:[%s1] sm:$0xf]
  %v31 = vld [vmem:[%s1 + $0x4] sm:$0xf]
  %v32 = vld [vmem:[%s1 + $0x8] sm:$0xf]
  %v33 = vld [vmem:[%s1 + $0xc] sm:$0xf]
  %v34 = vld [vmem:[%s1 + $0x10] sm:$0xf]
  %v35 = vld [vmem:[%s1 + $0x14] sm:$0xf]
  %v36 = vld [vmem:[%s1 + $0x18] sm:$0xf]
  %v37 = vld [vmem:[%s1 + $0x1c] sm:$0xf]
  %v38 = vld [vmem:[%s1 + $0x20] sm:$0xf]
  %v39 = vld [vmem:[%s1 + $0x24] sm:$0xf]
  %v40 = vld [vmem:[%s1 + $0x28] sm:$0xf]
  %v41 = vld [vmem:[%s1 + $0x2c] sm:$0xf]
  %v42 = vld [vmem:[%s1 + $0x30] sm:$0xf]
  %v43 = vld [vmem:[%s1 + $0x34] sm:$0xf]
  %v44 = vld [vmem:[%s1 + $0x38] sm:$0xf]
  %v45 = vld [vmem:[%s1 + $0x3c] sm:$0xf]
  %v62 = vunpack.c.l.b16 %v14
  %v63 = vunpack.c.l.b16 %v15
  %v64 = vunpack.c.l.b16 %v16
  %v65 = vunpack.c.l.b16 %v17
  %v66 = vunpack.c.l.b16 %v18
  %v67 = vunpack.c.l.b16 %v19
  %v68 = vunpack.c.l.b16 %v20
  %v69 = vunpack.c.l.b16 %v21
  %v70 = vunpack.c.l.b16 %v22
  %v71 = vunpack.c.l.b16 %v23
  %v72 = vunpack.c.l.b16 %v24
  %v73 = vunpack.c.l.b16 %v25
  %v74 = vunpack.c.l.b16 %v26
  %v75 = vunpack.c.l.b16 %v27
  %v76 = vunpack.c.l.b16 %v28
  %v77 = vunpack.c.l.b16 %v29
  %v78 = vpack.c.b16 %v63, %v62
  %v79 = vpack.c.b16 %v65, %v64
  %v80 = vpack.c.b16 %v67, %v66
  %v81 = vpack.c.b16 %v69, %v68
  %v82 = vpack.c.b16 %v71, %v70
  %v83 = vpack.c.b16 %v73, %v72
  %v84 = vpack.c.b16 %v75, %v74
  %v85 = vpack.c.b16 %v77, %v76
  %v110 = vunpack.c.l.b16 %v30
  %v111 = vunpack.c.l.b16 %v31
  %v112 = vunpack.c.l.b16 %v32
  %v113 = vunpack.c.l.b16 %v33
  %v114 = vunpack.c.l.b16 %v34
  %v115 = vunpack.c.l.b16 %v35
  %v116 = vunpack.c.l.b16 %v36
  %v117 = vunpack.c.l.b16 %v37
  %v118 = vunpack.c.l.b16 %v38
  %v119 = vunpack.c.l.b16 %v39
  %v120 = vunpack.c.l.b16 %v40
  %v121 = vunpack.c.l.b16 %v41
  %v122 = vunpack.c.l.b16 %v42
  %v123 = vunpack.c.l.b16 %v43
  %v124 = vunpack.c.l.b16 %v44
  %v125 = vunpack.c.l.b16 %v45
  %v126 = vpack.c.b16 %v111, %v110
  %v127 = vpack.c.b16 %v113, %v112
  %v128 = vpack.c.b16 %v115, %v114
  %v129 = vpack.c.b16 %v117, %v116
  %v130 = vpack.c.b16 %v119, %v118
  %v131 = vpack.c.b16 %v121, %v120
  %v132 = vpack.c.b16 %v123, %v122
  %v133 = vpack.c.b16 %v125, %v124
  %142 = vmatprep.subr.bf16.mxu0 0
  %143 = vmatpush1.bf16.msra.mxu0 %v126
  %144 = vmatprep.subr.bf16.mxu0 0
  %145 = vmatpush1.bf16.msra.mxu0 %v127
  %146 = vmatprep.subr.bf16.mxu0 0
  %147 = vmatpush1.bf16.msra.mxu0 %v128
  %148 = vmatprep.subr.bf16.mxu0 0
  %149 = vmatpush1.bf16.msra.mxu0 %v129
  %150 = vmatprep.subr.bf16.mxu0 0
  %151 = vmatpush1.bf16.msra.mxu0 %v130
  %152 = vmatprep.subr.bf16.mxu0 0
  %153 = vmatpush1.bf16.msra.mxu0 %v131
  %154 = vmatprep.subr.bf16.mxu0 0
  %155 = vmatpush1.bf16.msra.mxu0 %v132
  %156 = vmatprep.subr.bf16.mxu0 0
  %157 = vmatpush1.bf16.msra.mxu0 %v133
  %158 = vmatprep.subr.bf16.mxu0 0
  %159 = vmatpush1.bf16.msra.mxu0 0
  %160 = vmatprep.subr.bf16.mxu0 0
  %161 = vmatpush1.bf16.msra.mxu0 0
  %162 = vmatprep.subr.bf16.mxu0 0
  %163 = vmatpush1.bf16.msra.mxu0 0
  %164 = vmatprep.subr.bf16.mxu0 0
  %165 = vmatpush1.bf16.msra.mxu0 0
  %166 = vmatprep.subr.bf16.mxu0 0
  %167 = vmatpush1.bf16.msra.mxu0 0
  %168 = vmatprep.subr.bf16.mxu0 0
  %169 = vmatpush1.bf16.msra.mxu0 0
  %170 = vmatprep.subr.bf16.mxu0 0
  %171 = vmatpush1.bf16.msra.mxu0 0
  %172 = vmatprep.subr.bf16.mxu0 0
  %173 = vmatpush1.bf16.msra.mxu0 0
  %174 = vmatprep.mubr.bf16.mxu0 0
  %175 = vmatmul.mubr.bf16.gmra.mrb[0].mxu0 %v78
  %v176 = vpop.f32.mrb[0].mxu0
  %v177 = vadd.f32 0.0, %v176
  %v178 = vpop.f32.mrb[0].mxu0
  %v179 = vpop.f32.mrb[0].mxu0
  %v180 = vadd.f32 0.0, %v179
  %v181 = vpop.f32.mrb[0].mxu0
  %182 = vmatprep.mubr.bf16.mxu0 0
  %183 = vmatmul.mubr.bf16.gmra.mrb[0].mxu0 %v79
  %v184 = vpop.f32.mrb[0].mxu0
  %v185 = vadd.f32 0.0, %v184
  %v186 = vpop.f32.mrb[0].mxu0
  %v187 = vpop.f32.mrb[0].mxu0
  %v188 = vadd.f32 0.0, %v187
  %v189 = vpop.f32.mrb[0].mxu0
  %190 = vmatprep.mubr.bf16.mxu0 0
  %191 = vmatmul.mubr.bf16.gmra.mrb[0].mxu0 %v80
  %v192 = vpop.f32.mrb[0].mxu0
  %v193 = vadd.f32 0.0, %v192
  %v194 = vpop.f32.mrb[0].mxu0
  %v195 = vpop.f32.mrb[0].mxu0
  %v196 = vadd.f32 0.0, %v195
  %v197 = vpop.f32.mrb[0].mxu0
  %198 = vmatprep.mubr.bf16.mxu0 0
  %199 = vmatmul.mubr.bf16.gmra.mrb[0].mxu0 %v81
  %v200 = vpop.f32.mrb[0].mxu0
  %v201 = vadd.f32 0.0, %v200
  %v202 = vpop.f32.mrb[0].mxu0
  %v203 = vpop.f32.mrb[0].mxu0
  %v204 = vadd.f32 0.0, %v203
  %v205 = vpop.f32.mrb[0].mxu0
  %206 = vmatprep.mubr.bf16.mxu0 0
  %207 = vmatmul.mubr.bf16.gmra.mrb[0].mxu0 %v82
  %v208 = vpop.f32.mrb[0].mxu0
  %v209 = vadd.f32 0.0, %v208
  %v210 = vpop.f32.mrb[0].mxu0
  %v211 = vpop.f32.mrb[0].mxu0
  %v212 = vadd.f32 0.0, %v211
  %v213 = vpop.f32.mrb[0].mxu0
  %214 = vmatprep.mubr.bf16.mxu0 0
  %215 = vmatmul.mubr.bf16.gmra.mrb[0].mxu0 %v83
  %v216 = vpop.f32.mrb[0].mxu0
  %v217 = vadd.f32 0.0, %v216
  %v218 = vpop.f32.mrb[0].mxu0
  %v219 = vpop.f32.mrb[0].mxu0
  %v220 = vadd.f32 0.0, %v219
  %v221 = vpop.f32.mrb[0].mxu0
  %222 = vmatprep.mubr.bf16.mxu0 0
  %223 = vmatmul.mubr.bf16.gmra.mrb[0].mxu0 %v84
  %v224 = vpop.f32.mrb[0].mxu0
  %v225 = vadd.f32 0.0, %v224
  %v226 = vpop.f32.mrb[0].mxu0
  %v227 = vpop.f32.mrb[0].mxu0
  %v228 = vadd.f32 0.0, %v227
  %v229 = vpop.f32.mrb[0].mxu0
  %230 = vmatprep.mubr.bf16.mxu0 0
  %231 = vmatmul.mubr.bf16.gmra.mrb[0].mxu0 %v85
  %v232 = vpop.f32.mrb[0].mxu0
  %v233 = vadd.f32 0.0, %v232
  %v234 = vpop.f32.mrb[0].mxu0
  %v235 = vpop.f32.mrb[0].mxu0
  %v236 = vadd.f32 0.0, %v235
  %v237 = vpop.f32.mrb[0].mxu0
  %238 = vdwg.mxu0
  %v239 = vpack.c.bf16 %v180, %v177
  %v240 = vpack.c.bf16 %v188, %v185
  %v241 = vpack.c.bf16 %v196, %v193
  %v242 = vpack.c.bf16 %v204, %v201
  %v243 = vpack.c.bf16 %v212, %v209
  %v244 = vpack.c.bf16 %v220, %v217
  %v245 = vpack.c.bf16 %v228, %v225
  %v246 = vpack.c.bf16 %v236, %v233
  %v255 = vunpack.c.l.b16 %v239
  %v256 = vunpack.c.h.b16 %v239
  %v257 = vunpack.c.l.b16 %v240
  %v258 = vunpack.c.h.b16 %v240
  %v259 = vunpack.c.l.b16 %v241
  %v260 = vunpack.c.h.b16 %v241
  %v261 = vunpack.c.l.b16 %v242
  %v262 = vunpack.c.h.b16 %v242
  %v263 = vunpack.c.l.b16 %v243
  %v264 = vunpack.c.h.b16 %v243
  %v265 = vunpack.c.l.b16 %v244
  %v266 = vunpack.c.h.b16 %v244
  %v267 = vunpack.c.l.b16 %v245
  %v268 = vunpack.c.h.b16 %v245
  %v269 = vunpack.c.l.b16 %v246
  %v270 = vunpack.c.h.b16 %v246
  %v271 = vpack.c.b16 %v255, %v255
  %v272 = vpack.c.b16 %v256, %v256
  %v273 = vpack.c.b16 %v257, %v257
  %v274 = vpack.c.b16 %v258, %v258
  %v275 = vpack.c.b16 %v259, %v259
  %v276 = vpack.c.b16 %v260, %v260
  %v277 = vpack.c.b16 %v261, %v261
  %v278 = vpack.c.b16 %v262, %v262
  %v279 = vpack.c.b16 %v263, %v263
  %v280 = vpack.c.b16 %v264, %v264
  %v281 = vpack.c.b16 %v265, %v265
  %v282 = vpack.c.b16 %v266, %v266
  %v283 = vpack.c.b16 %v267, %v267
  %v284 = vpack.c.b16 %v268, %v268
  %v285 = vpack.c.b16 %v269, %v269
  %v286 = vpack.c.b16 %v270, %v270
  %303 = vst [vmem:[%s2] sm:$0xf] %v271
  %304 = vst [vmem:[%s2 + $0x4] sm:$0xf] %v272
  %305 = vst [vmem:[%s2 + $0x8] sm:$0xf] %v273
  %306 = vst [vmem:[%s2 + $0xc] sm:$0xf] %v274
  %307 = vst [vmem:[%s2 + $0x10] sm:$0xf] %v275
  %308 = vst [vmem:[%s2 + $0x14] sm:$0xf] %v276
  %309 = vst [vmem:[%s2 + $0x18] sm:$0xf] %v277
  %310 = vst [vmem:[%s2 + $0x1c] sm:$0xf] %v278
  %311 = vst [vmem:[%s2 + $0x20] sm:$0xf] %v279
  %312 = vst [vmem:[%s2 + $0x24] sm:$0xf] %v280
  %313 = vst [vmem:[%s2 + $0x28] sm:$0xf] %v281
  %314 = vst [vmem:[%s2 + $0x2c] sm:$0xf] %v282
  %315 = vst [vmem:[%s2 + $0x30] sm:$0xf] %v283
  %316 = vst [vmem:[%s2 + $0x34] sm:$0xf] %v284
  %317 = vst [vmem:[%s2 + $0x38] sm:$0xf] %v285
  %318 = vst [vmem:[%s2 + $0x3c] sm:$0xf] %v286
  %v319 = vadd.f32 %v177, %v180
  %v320 = vadd.f32 %v319, %v185
  %v321 = vadd.f32 %v320, %v188
  %v322 = vadd.f32 %v321, %v193
  %v323 = vadd.f32 %v322, %v196
  %v324 = vadd.f32 %v323, %v201
  %v325 = vadd.f32 %v324, %v204
  %v326 = vadd.f32 %v325, %v209
  %v327 = vadd.f32 %v326, %v212
  %v328 = vadd.f32 %v327, %v217
  %v329 = vadd.f32 %v328, %v220
  %v330 = vadd.f32 %v329, %v225
  %v331 = vadd.f32 %v330, %v228
  %v332 = vadd.f32 %v331, %v233
  %v333 = vadd.f32 %v332, %v236
  %v334 = vrot.slane %v333, 4
  %v335 = vadd.f32 %v333, %v334
  %v336 = vrot.slane %v335, 2
  %v337 = vadd.f32 %v335, %v336
  %v338 = vrot.slane %v337, 1
  %v339 = vadd.f32 %v337, %v338
  %340 = vst [vmem:[%s3] sm:$0x1] %v339
  %v341 = vmul.f32 %v177, %v177
  %v342 = vmul.f32 %v180, %v180
  %v343 = vmul.f32 %v185, %v185
  %v344 = vmul.f32 %v188, %v188
  %v345 = vmul.f32 %v193, %v193
  %v346 = vmul.f32 %v196, %v196
  %v347 = vmul.f32 %v201, %v201
  %v348 = vmul.f32 %v204, %v204
  %v349 = vmul.f32 %v209, %v209
  %v350 = vmul.f32 %v212, %v212
  %v351 = vmul.f32 %v217, %v217
  %v352 = vmul.f32 %v220, %v220
  %v353 = vmul.f32 %v225, %v225
  %v354 = vmul.f32 %v228, %v228
  %v355 = vmul.f32 %v233, %v233
  %v356 = vmul.f32 %v236, %v236
  %v357 = vadd.f32 %v341, %v342
  %v358 = vadd.f32 %v357, %v343
  %v359 = vadd.f32 %v358, %v344
  %v360 = vadd.f32 %v359, %v345
  %v361 = vadd.f32 %v360, %v346
  %v362 = vadd.f32 %v361, %v347
  %v363 = vadd.f32 %v362, %v348
  %v364 = vadd.f32 %v363, %v349
  %v365 = vadd.f32 %v364, %v350
  %v366 = vadd.f32 %v365, %v351
  %v367 = vadd.f32 %v366, %v352
  %v368 = vadd.f32 %v367, %v353
  %v369 = vadd.f32 %v368, %v354
  %v370 = vadd.f32 %v369, %v355
  %v371 = vadd.f32 %v370, %v356
  %v372 = vrot.slane %v371, 4
  %v373 = vadd.f32 %v371, %v372
  %v374 = vrot.slane %v373, 2
  %v375 = vadd.f32 %v373, %v374
  %v376 = vrot.slane %v375, 1
  %v377 = vadd.f32 %v375, %v376
  %378 = vst [vmem:[%s3 + $0x1] sm:$0x1] %v377
  // Predicated region
  $region10: #{dla_basic_block_forward.5} parent=0 // pred_check
    _
  $region11: #{dla_basic_block_forward.5} parent=0 // pred_check_branch
    %380 = sbr.rel (0) target = $region13
  $region12: #{dla_basic_block_forward.5} parent=0 // pred_region
    _
  $region13: #{dla_basic_block_forward.5} parent=0 // pred_fallthru
    _
  // Predicated region
  $region14: #{dla_basic_block_forward.5} parent=0 // pred_check
    _
  $region15: #{dla_basic_block_forward.5} parent=0 // pred_check_branch
    %382 = sbr.rel (0) target = $region17
  $region16: #{dla_basic_block_forward.5} parent=0 // pred_region
    _
  $region17: #{dla_basic_block_forward.5} parent=0 // pred_fallthru
    _
  // Predicated region
  $region18: #{dla_basic_block_forward.5} parent=0 // pred_check
    _
  $region19: #{dla_basic_block_forward.5} parent=0 // pred_check_branch
    %384 = sbr.rel (0) target = $region21
  $region20: #{dla_basic_block_forward.5} parent=0 // pred_region
    _
  $region21: #{dla_basic_block_forward.5} parent=0 // pred_fallthru
    _
  // Predicated region
  $region22: #{dla_basic_block_forward.5} parent=0 // pred_check
    _
  $region23: #{dla_basic_block_forward.5} parent=0 // pred_check_branch
    %386 = sbr.rel (0) target = $region25
  $region24: #{dla_basic_block_forward.5} parent=0 // pred_region
    _
  $region25: #{dla_basic_block_forward.5} parent=0 // pred_fallthru
    _

// kernel: dla_basic_block_forward.9
$region0: #{dla_basic_block_forward.9}
  #allocation0 [shape = 'u32[]', space=smem, size = 0x4, offset = 0x4, fixed_abs, tag = 'smem constant byte address 0x4 - core index']
  #allocation1 [shape = 'u32[144,128]{1,0:T(1,128)}', space=vmem, size = 0x12000, scoped, tag = 'internal scratch']
  %s0 = inlined_call_operand.vmem [shape: bf16[128,128], index: 0, kind: input, shape index: {}]
  %s1 = inlined_call_operand.vmem [shape: f32[1,128], index: 1, kind: input, shape index: {}]
  %s2 = inlined_call_operand.vmem [shape: f32[1,128], index: 2, kind: input, shape index: {}]
  %s3 = inlined_call_operand.vmem [shape: bf16[128,128], index: 3, kind: input, shape index: {}]
  %s4 = inlined_call_operand.vmem [shape: f32[1,128], index: 4, kind: input, shape index: {}]
  %s5 = inlined_call_operand.vmem [shape: f32[1,128], index: 5, kind: input, shape index: {}]
  %s6 = inlined_call_operand.vmem [shape: f32[128,128], index: 6, kind: output, shape index: {}]
  %s7 = sld [smem:[#allocation0]]
  $region34: #{dla_basic_block_forward.9} parent=0
    _
  %s9 = ssub.s32 1, %s7
  %s10 = scalar_select 0, %s9, %s7
  // Predicated region
  $region2: #{dla_basic_block_forward.9} parent=0 // pred_check
    _
  $region3: #{dla_basic_block_forward.9} parent=0 // pred_check_branch
    %12 = sbr.rel (0) target = $region5
  $region4: #{dla_basic_block_forward.9} parent=0 // pred_region
    _
  $region5: #{dla_basic_block_forward.9} parent=0 // pred_fallthru
    _
  // Predicated region
  $region6: #{dla_basic_block_forward.9} parent=0 // pred_check
    _
  $region7: #{dla_basic_block_forward.9} parent=0 // pred_check_branch
    %14 = sbr.rel (0) target = $region9
  $region8: #{dla_basic_block_forward.9} parent=0 // pred_region
    _
  $region9: #{dla_basic_block_forward.9} parent=0 // pred_fallthru
    _
  // Predicated region
  $region10: #{dla_basic_block_forward.9} parent=0 // pred_check
    _
  $region11: #{dla_basic_block_forward.9} parent=0 // pred_check_branch
    %16 = sbr.rel (0) target = $region13
  $region12: #{dla_basic_block_forward.9} parent=0 // pred_region
    _
  $region13: #{dla_basic_block_forward.9} parent=0 // pred_fallthru
    _
  // Predicated region
  $region14: #{dla_basic_block_forward.9} parent=0 // pred_check
    _
  $region15: #{dla_basic_block_forward.9} parent=0 // pred_check_branch
    %18 = sbr.rel (0) target = $region17
  $region16: #{dla_basic_block_forward.9} parent=0 // pred_region
    _
  $region17: #{dla_basic_block_forward.9} parent=0 // pred_fallthru
    _
  // Predicated region
  $region18: #{dla_basic_block_forward.9} parent=0 // pred_check
    _
  $region19: #{dla_basic_block_forward.9} parent=0 // pred_check_branch
    %20 = sbr.rel (0) target = $region21
  $region20: #{dla_basic_block_forward.9} parent=0 // pred_region
    _
  $region21: #{dla_basic_block_forward.9} parent=0 // pred_fallthru
    _
  // Predicated region
  $region22: #{dla_basic_block_forward.9} parent=0 // pred_check
    _
  $region23: #{dla_basic_block_forward.9} parent=0 // pred_check_branch
    %22 = sbr.rel (0) target = $region25
  $region24: #{dla_basic_block_forward.9} parent=0 // pred_region
    _
  $region25: #{dla_basic_block_forward.9} parent=0 // pred_fallthru
    _
  %v23 = vld [vmem:[%s0] sm:$0xf]
  %v24 = vld [vmem:[%s0 + $0x4] sm:$0xf]
  %v25 = vld [vmem:[%s0 + $0x8] sm:$0xf]
  %v26 = vld [vmem:[%s0 + $0xc] sm:$0xf]
  %v27 = vld [vmem:[%s0 + $0x10] sm:$0xf]
  %v28 = vld [vmem:[%s0 + $0x14] sm:$0xf]
  %v29 = vld [vmem:[%s0 + $0x18] sm:$0xf]
  %v30 = vld [vmem:[%s0 + $0x1c] sm:$0xf]
  %v31 = vld [vmem:[%s0 + $0x20] sm:$0xf]
  %v32 = vld [vmem:[%s0 + $0x24] sm:$0xf]
  %v33 = vld [vmem:[%s0 + $0x28] sm:$0xf]
  %v34 = vld [vmem:[%s0 + $0x2c] sm:$0xf]
  %v35 = vld [vmem:[%s0 + $0x30] sm:$0xf]
  %v36 = vld [vmem:[%s0 + $0x34] sm:$0xf]
  %v37 = vld [vmem:[%s0 + $0x38] sm:$0xf]
  %v38 = vld [vmem:[%s0 + $0x3c] sm:$0xf]
  %v39 = vunpack.c.l.bf16 %v23
  %v40 = vunpack.c.l.bf16 %v24
  %v41 = vunpack.c.l.bf16 %v25
  %v42 = vunpack.c.l.bf16 %v26
  %v43 = vunpack.c.l.bf16 %v27
  %v44 = vunpack.c.l.bf16 %v28
  %v45 = vunpack.c.l.bf16 %v29
  %v46 = vunpack.c.l.bf16 %v30
  %v47 = vunpack.c.l.bf16 %v31
  %v48 = vunpack.c.l.bf16 %v32
  %v49 = vunpack.c.l.bf16 %v33
  %v50 = vunpack.c.l.bf16 %v34
  %v51 = vunpack.c.l.bf16 %v35
  %v52 = vunpack.c.l.bf16 %v36
  %v53 = vunpack.c.l.bf16 %v37
  %v54 = vunpack.c.l.bf16 %v38
  %v55 = vld [vmem:[%s1] sm:$0x1]
  %v57 = vlaneseq
  %v58 = vshrl.u32 %v57, 7
  %v59 = vsub.s32 0, %v58
  %v60 = vrot.slane %v55, %v59
  %v62 = vmul.f32 %v39, %v60
  %v63 = vmul.f32 %v40, %v60
  %v64 = vmul.f32 %v41, %v60
  %v65 = vmul.f32 %v42, %v60
  %v66 = vmul.f32 %v43, %v60
  %v67 = vmul.f32 %v44, %v60
  %v68 = vmul.f32 %v45, %v60
  %v69 = vmul.f32 %v46, %v60
  %v70 = vmul.f32 %v47, %v60
  %v71 = vmul.f32 %v48, %v60
  %v72 = vmul.f32 %v49, %v60
  %v73 = vmul.f32 %v50, %v60
  %v74 = vmul.f32 %v51, %v60
  %v75 = vmul.f32 %v52, %v60
  %v76 = vmul.f32 %v53, %v60
  %v77 = vmul.f32 %v54, %v60
  %v78 = vld [vmem:[%s2] sm:$0x1]
  %v80 = vlaneseq
  %v81 = vshrl.u32 %v80, 7
  %v82 = vsub.s32 0, %v81
  %v83 = vrot.slane %v78, %v82
  %v85 = vadd.f32 %v62, %v83
  %v86 = vadd.f32 %v63, %v83
  %v87 = vadd.f32 %v64, %v83
  %v88 = vadd.f32 %v65, %v83
  %v89 = vadd.f32 %v66, %v83
  %v90 = vadd.f32 %v67, %v83
  %v91 = vadd.f32 %v68, %v83
  %v92 = vadd.f32 %v69, %v83
  %v93 = vadd.f32 %v70, %v83
  %v94 = vadd.f32 %v71, %v83
  %v95 = vadd.f32 %v72, %v83
  %v96 = vadd.f32 %v73, %v83
  %v97 = vadd.f32 %v74, %v83
  %v98 = vadd.f32 %v75, %v83
  %v99 = vadd.f32 %v76, %v83
  %v100 = vadd.f32 %v77, %v83
  %v101 = vld [vmem:[%s3] sm:$0xf]
  %v102 = vld [vmem:[%s3 + $0x4] sm:$0xf]
  %v103 = vld [vmem:[%s3 + $0x8] sm:$0xf]
  %v104 = vld [vmem:[%s3 + $0xc] sm:$0xf]
  %v105 = vld [vmem:[%s3 + $0x10] sm:$0xf]
  %v106 = vld [vmem:[%s3 + $0x14] sm:$0xf]
  %v107 = vld [vmem:[%s3 + $0x18] sm:$0xf]
  %v108 = vld [vmem:[%s3 + $0x1c] sm:$0xf]
  %v109 = vld [vmem:[%s3 + $0x20] sm:$0xf]
  %v110 = vld [vmem:[%s3 + $0x24] sm:$0xf]
  %v111 = vld [vmem:[%s3 + $0x28] sm:$0xf]
  %v112 = vld [vmem:[%s3 + $0x2c] sm:$0xf]
  %v113 = vld [vmem:[%s3 + $0x30] sm:$0xf]
  %v114 = vld [vmem:[%s3 + $0x34] sm:$0xf]
  %v115 = vld [vmem:[%s3 + $0x38] sm:$0xf]
  %v116 = vld [vmem:[%s3 + $0x3c] sm:$0xf]
  %v117 = vunpack.c.l.bf16 %v101
  %v118 = vunpack.c.l.bf16 %v102
  %v119 = vunpack.c.l.bf16 %v103
  %v120 = vunpack.c.l.bf16 %v104
  %v121 = vunpack.c.l.bf16 %v105
  %v122 = vunpack.c.l.bf16 %v106
  %v123 = vunpack.c.l.bf16 %v107
  %v124 = vunpack.c.l.bf16 %v108
  %v125 = vunpack.c.l.bf16 %v109
  %v126 = vunpack.c.l.bf16 %v110
  %v127 = vunpack.c.l.bf16 %v111
  %v128 = vunpack.c.l.bf16 %v112
  %v129 = vunpack.c.l.bf16 %v113
  %v130 = vunpack.c.l.bf16 %v114
  %v131 = vunpack.c.l.bf16 %v115
  %v132 = vunpack.c.l.bf16 %v116
  %v133 = vld [vmem:[%s4] sm:$0x1]
  %v135 = vlaneseq
  %v136 = vshrl.u32 %v135, 7
  %v137 = vsub.s32 0, %v136
  %v138 = vrot.slane %v133, %v137
  %v140 = vmul.f32 %v117, %v138
  %v141 = vmul.f32 %v118, %v138
  %v142 = vmul.f32 %v119, %v138
  %v143 = vmul.f32 %v120, %v138
  %v144 = vmul.f32 %v121, %v138
  %v145 = vmul.f32 %v122, %v138
  %v146 = vmul.f32 %v123, %v138
  %v147 = vmul.f32 %v124, %v138
  %v148 = vmul.f32 %v125, %v138
  %v149 = vmul.f32 %v126, %v138
  %v150 = vmul.f32 %v127, %v138
  %v151 = vmul.f32 %v128, %v138
  %v152 = vmul.f32 %v129, %v138
  %v153 = vmul.f32 %v130, %v138
  %v154 = vmul.f32 %v131, %v138
  %v155 = vmul.f32 %v132, %v138
  %v156 = vadd.f32 %v85, %v140
  %v157 = vadd.f32 %v86, %v141
  %v158 = vadd.f32 %v87, %v142
  %v159 = vadd.f32 %v88, %v143
  %v160 = vadd.f32 %v89, %v144
  %v161 = vadd.f32 %v90, %v145
  %v162 = vadd.f32 %v91, %v146
  %v163 = vadd.f32 %v92, %v147
  %v164 = vadd.f32 %v93, %v148
  %v165 = vadd.f32 %v94, %v149
  %v166 = vadd.f32 %v95, %v150
  %v167 = vadd.f32 %v96, %v151
  %v168 = vadd.f32 %v97, %v152
  %v169 = vadd.f32 %v98, %v153
  %v170 = vadd.f32 %v99, %v154
  %v171 = vadd.f32 %v100, %v155
  %v172 = vld [vmem:[%s5] sm:$0x1]
  %v174 = vlaneseq
  %v175 = vshrl.u32 %v174, 7
  %v176 = vsub.s32 0, %v175
  %v177 = vrot.slane %v172, %v176
  %v179 = vadd.f32 %v156, %v177
  %v180 = vadd.f32 %v157, %v177
  %v181 = vadd.f32 %v158, %v177
  %v182 = vadd.f32 %v159, %v177
  %v183 = vadd.f32 %v160, %v177
  %v184 = vadd.f32 %v161, %v177
  %v185 = vadd.f32 %v162, %v177
  %v186 = vadd.f32 %v163, %v177
  %v187 = vadd.f32 %v164, %v177
  %v188 = vadd.f32 %v165, %v177
  %v189 = vadd.f32 %v166, %v177
  %v190 = vadd.f32 %v167, %v177
  %v191 = vadd.f32 %v168, %v177
  %v192 = vadd.f32 %v169, %v177
  %v193 = vadd.f32 %v170, %v177
  %v194 = vadd.f32 %v171, %v177
  %v195 = vmax.f32 %v179, 0.0
  %v196 = vmax.f32 %v180, 0.0
  %v197 = vmax.f32 %v181, 0.0
  %v198 = vmax.f32 %v182, 0.0
  %v199 = vmax.f32 %v183, 0.0
  %v200 = vmax.f32 %v184, 0.0
  %v201 = vmax.f32 %v185, 0.0
  %v202 = vmax.f32 %v186, 0.0
  %v203 = vmax.f32 %v187, 0.0
  %v204 = vmax.f32 %v188, 0.0
  %v205 = vmax.f32 %v189, 0.0
  %v206 = vmax.f32 %v190, 0.0
  %v207 = vmax.f32 %v191, 0.0
  %v208 = vmax.f32 %v192, 0.0
  %v209 = vmax.f32 %v193, 0.0
  %v210 = vmax.f32 %v194, 0.0
  %211 = vst [vmem:[%s6] sm:$0xff] %v195
  %212 = vst [vmem:[%s6 + $0x8] sm:$0xff] %v196
  %213 = vst [vmem:[%s6 + $0x10] sm:$0xff] %v197
  %214 = vst [vmem:[%s6 + $0x18] sm:$0xff] %v198
  %215 = vst [vmem:[%s6 + $0x20] sm:$0xff] %v199
  %216 = vst [vmem:[%s6 + $0x28] sm:$0xff] %v200
  %217 = vst [vmem:[%s6 + $0x30] sm:$0xff] %v201
  %218 = vst [vmem:[%s6 + $0x38] sm:$0xff] %v202
  %219 = vst [vmem:[%s6 + $0x40] sm:$0xff] %v203
  %220 = vst [vmem:[%s6 + $0x48] sm:$0xff] %v204
  %221 = vst [vmem:[%s6 + $0x50] sm:$0xff] %v205
  %222 = vst [vmem:[%s6 + $0x58] sm:$0xff] %v206
  %223 = vst [vmem:[%s6 + $0x60] sm:$0xff] %v207
  %224 = vst [vmem:[%s6 + $0x68] sm:$0xff] %v208
  %225 = vst [vmem:[%s6 + $0x70] sm:$0xff] %v209
  %226 = vst [vmem:[%s6 + $0x78] sm:$0xff] %v210
  // Predicated region
  $region26: #{dla_basic_block_forward.9} parent=0 // pred_check
    _
  $region27: #{dla_basic_block_forward.9} parent=0 // pred_check_branch
    %228 = sbr.rel (0) target = $region29
  $region28: #{dla_basic_block_forward.9} parent=0 // pred_region
    _
  $region29: #{dla_basic_block_forward.9} parent=0 // pred_fallthru
    _
  // Predicated region
  $region30: #{dla_basic_block_forward.9} parent=0 // pred_check
    _
  $region31: #{dla_basic_block_forward.9} parent=0 // pred_check_branch
    %230 = sbr.rel (0) target = $region33
  $region32: #{dla_basic_block_forward.9} parent=0 // pred_region
    _
  $region33: #{dla_basic_block_forward.9} parent=0 // pred_fallthru
    _

</llo_original>
